<compile_context>
chip_gen: v5e
topology: v5e:2x2
jax: 0.10.0
libtpu: 0.0.40
codegen_flags: <defaults>
</compile_context>

<pallas_src>
import functools

import jax
import jax.numpy as jnp
from jax.experimental import pallas as pl
from jax.experimental.pallas import tpu as pltpu


def _round_up(x: int, m: int) -> int:
    return (x + m - 1) // m * m


def _residual_kernel(x_ref, w1_ref, b1_ref, w2_ref, b2_ref, o_ref):
    # x_ref : (TR, C)  input row tile (input dtype, f32 in the demo)
    # w1_ref: (C, C)   bf16, already transposed -> [in, out]
    # b1_ref: (1, C)   f32
    # w2_ref: (C, C)   bf16
    # b2_ref: (1, C)   f32
    # o_ref : (TR, C)
    x = x_ref[...]
    x_f32 = x.astype(jnp.float32)
    # MXU in bf16, accumulate in f32.
    h = jnp.dot(x.astype(jnp.bfloat16), w1_ref[...],
                preferred_element_type=jnp.float32)
    h = jnp.maximum(h + b1_ref[...], 0.0)                    # f32 VPU
    y = jnp.dot(h.astype(jnp.bfloat16), w2_ref[...],
                preferred_element_type=jnp.float32)
    y = y + b2_ref[...]
    o_ref[...] = jnp.maximum(x_f32 + y, 0.0).astype(o_ref.dtype)


def _pick_block_rows(rows: int, c_pad: int, requested):
    if requested is not None:
        return max(8, _round_up(requested, 8))
    # ~512 rows sits at/near the HBM roofline for the streaming (x, y) path.
    target = 512
    # Keep the per-tile f32 working set (x, h, y) modest so nothing spills.
    by_width = max(8, (((6 << 20) // (3 * 4 * c_pad)) // 8) * 8)
    target = min(target, by_width)
    rows8 = _round_up(rows, 8)
    if rows8 <= target:
        # Small input: split into >= 2 tiles so both v7x TensorCores get work.
        target = max(8, min(target, _round_up(pl.cdiv(rows8, 2), 8)))
    return target


@functools.partial(jax.jit, static_argnames=("block_rows",))
def residual_layer(x, w1, b1, w2, b2, *, block_rows=None):
    """relu(x + relu(x @ w1.T + b1) @ w2.T + b2) over the last dim of x.

    x  : (..., C)
    w1 : (C, C)  PyTorch-convention weight (out, in)
    b1 : (C,)
    w2 : (C, C)
    b2 : (C,)
    """
    orig_shape = x.shape
    C = orig_shape[-1]
    x2 = x.reshape(-1, C)
    R = x2.shape[0]

    # Channel padding: lane-dense last dim (multiple of 128).
    C_pad = _round_up(C, 128)

    # Row tiling (cdiv-style: pad rows up to a multiple of the tile).
    br = _pick_block_rows(R, C_pad, block_rows)
    R_pad = _round_up(R, br)
    grid = (R_pad // br,)

    padded = (R_pad != R) or (C_pad != C)
    if padded:
        x2 = jnp.pad(x2, ((0, R_pad - R), (0, C_pad - C)))

    # Weights: transpose to [in, out] so the kernel does x @ W (== x @ W_pt.T)
    # and cast to bf16 for the MXU; biases stay f32 for the VPU epilogue.
    w1t = jnp.pad(w1.T.astype(jnp.bfloat16), ((0, C_pad - C), (0, C_pad - C)))
    w2t = jnp.pad(w2.T.astype(jnp.bfloat16), ((0, C_pad - C), (0, C_pad - C)))
    b1r = jnp.pad(b1.astype(jnp.float32), (0, C_pad - C)).reshape(1, C_pad)
    b2r = jnp.pad(b2.astype(jnp.float32), (0, C_pad - C)).reshape(1, C_pad)

    # VMEM budget (auto-pipeliner double-buffers every input/output block).
    x_bytes = x2.dtype.itemsize
    out_bytes = jnp.dtype(x.dtype).itemsize
    weight_bytes = 2 * (2 * C_pad * C_pad * 2 + 2 * C_pad * 4)   # 2 bufs each
    tile_bytes = 2 * br * C_pad * (x_bytes + out_bytes)          # x/out tiles
    est = weight_bytes + tile_bytes
    if est > (48 << 20):
        # TODO(synk): add an N/K channel-tiled (or two-pass) variant for very
        # wide channels whose resident weights do not fit v7x's 64 MiB VMEM.
        raise ValueError(
            f"channels={C} too wide for the resident-weight kernel "
            f"(needs ~{est >> 20} MiB VMEM); use a channel-tiled variant.")
    vmem_limit = min(max(int(est * 1.5) + (4 << 20), 32 << 20), 96 << 20)

    # Alias x's (padded, intermediate) buffer with the output when possible —
    # saves one activation-sized HBM allocation. Skipped when x2 may alias the
    # caller's un-donated input (XLA would insert a copy and cost bandwidth).
    io_aliases = {0: 0} if (padded and x2.dtype == jnp.dtype(x.dtype)) else {}

    out = pl.pallas_call(
        _residual_kernel,
        out_shape=jax.ShapeDtypeStruct((R_pad, C_pad), x.dtype),
        grid_spec=pltpu.PrefetchScalarGridSpec(
            num_scalar_prefetch=0,
            grid=grid,
            in_specs=[
                pl.BlockSpec((br, C_pad), lambda i: (i, 0)),      # x tile
                pl.BlockSpec((C_pad, C_pad), lambda i: (0, 0)),   # w1^T (bf16)
                pl.BlockSpec((1, C_pad), lambda i: (0, 0)),       # b1 (f32)
                pl.BlockSpec((C_pad, C_pad), lambda i: (0, 0)),   # w2^T (bf16)
                pl.BlockSpec((1, C_pad), lambda i: (0, 0)),       # b2 (f32)
            ],
            out_specs=pl.BlockSpec((br, C_pad), lambda i: (i, 0)),
        ),
        compiler_params=pltpu.CompilerParams(
            dimension_semantics=("parallel",),
            vmem_limit_bytes=vmem_limit,
        ),
        input_output_aliases=io_aliases,
    )(x2, w1t, b1r, w2t, b2r)

    out = out[:R, :C]
    return out.reshape(orig_shape)


def _torch_linear_init(key, out_features, in_features):
    # Deterministic init mimicking PyTorch nn.Linear defaults:
    # U(-1/sqrt(fan_in), 1/sqrt(fan_in)) for both weight and bias.
    kw, kb = jax.random.split(key)
    bound = 1.0 / jnp.sqrt(in_features)
    w = jax.random.uniform(kw, (out_features, in_features), jnp.float32, -bound, bound)
    b = jax.random.uniform(kb, (out_features,), jnp.float32, -bound, bound)
    return w, b


def _reference(x, w1, b1, w2, b2):
    h = jnp.maximum(jnp.einsum("...c,oc->...o", x, w1) + b1, 0.0)
    y = jnp.einsum("...c,oc->...o", h, w2) + b2
    return jnp.maximum(x + y, 0.0)


if __name__ == "__main__":
    key = jax.random.PRNGKey(0)
    k_x, k_l1, k_l2 = jax.random.split(key, 3)

    batch, seq, channels = 2, 16, 32  # small shapes; Linear acts on channels
    x = jax.random.normal(k_x, (batch, seq, channels), jnp.float32)

    w1, b1 = _torch_linear_init(k_l1, channels, channels)
    w2, b2 = _torch_linear_init(k_l2, channels, channels)

    out = residual_layer(x, w1, b1, w2, b2)
    out = jax.block_until_ready(out)

    ref = _reference(x, w1, b1, w2, b2)
    assert out.shape == x.shape
    # bf16 MXU operands with f32 accumulation -> relaxed tolerance vs f32 ref.
    err = float(jnp.max(jnp.abs(out - ref)))
    assert jnp.allclose(out, ref, atol=5e-2, rtol=5e-2), f"max abs err {err}"

    print("KERNEL_OK")
</pallas_src>

<mosaic_0001>
module attributes {stable_mosaic.version = 11 : i64} {
  func.func @_residual_kernel(%arg0: i32, %arg1: memref<16x128xf32, #tpu.memory_space<vmem>>, %arg2: memref<128x128xbf16, #tpu.memory_space<vmem>>, %arg3: memref<1x128xf32, #tpu.memory_space<vmem>>, %arg4: memref<128x128xbf16, #tpu.memory_space<vmem>>, %arg5: memref<1x128xf32, #tpu.memory_space<vmem>>, %arg6: memref<16x128xf32, #tpu.memory_space<vmem>>) attributes {dimension_semantics = [#tpu.dimension_semantics<parallel>], iteration_bounds = array<i64: 2>, scalar_prefetch = 0 : i64, scratch_operands = 0 : i64, tpu.core_type = #tpu.core_type<tc>, window_params = [{transform_indices = @transform_0, window_bounds = array<i64: 16, 128>}, {pipeline_mode = #tpu.pipeline_mode<synchronous>, transform_indices = @transform_1, window_bounds = array<i64: 128, 128>}, {pipeline_mode = #tpu.pipeline_mode<synchronous>, transform_indices = @transform_2, window_bounds = array<i64: 1, 128>}, {pipeline_mode = #tpu.pipeline_mode<synchronous>, transform_indices = @transform_3, window_bounds = array<i64: 128, 128>}, {pipeline_mode = #tpu.pipeline_mode<synchronous>, transform_indices = @transform_4, window_bounds = array<i64: 1, 128>}, {transform_indices = @transform_5, window_bounds = array<i64: 16, 128>}]} {
    %c0 = arith.constant 0 : index
    %c0_0 = arith.constant 0 : index
    %0 = vector.load %arg1[%c0, %c0_0] : memref<16x128xf32, #tpu.memory_space<vmem>>, vector<16x128xf32>
    %1 = arith.truncf %0 : vector<16x128xf32> to vector<16x128xbf16>
    %c0_1 = arith.constant 0 : index
    %c0_2 = arith.constant 0 : index
    %2 = vector.load %arg2[%c0_1, %c0_2] : memref<128x128xbf16, #tpu.memory_space<vmem>>, vector<128x128xbf16>
    %cst = arith.constant dense<0.000000e+00> : vector<16x128xf32>
    %3 = tpu.matmul %1, %2, %cst {dimension_numbers = #tpu.dot_dimension_numbers<[1], [0], [0], [1], [0, 0, 1, 1], [], []>} : vector<16x128xbf16>, vector<128x128xbf16>, vector<16x128xf32> -> vector<16x128xf32>
    %c0_3 = arith.constant 0 : index
    %c0_4 = arith.constant 0 : index
    %4 = vector.load %arg3[%c0_3, %c0_4] : memref<1x128xf32, #tpu.memory_space<vmem>>, vector<1x128xf32>
    %5 = vector.broadcast %4 : vector<1x128xf32> to vector<16x128xf32>
    %6 = arith.addf %3, %5 : vector<16x128xf32>
    %cst_5 = arith.constant 0.000000e+00 : f32
    %7 = vector.broadcast %cst_5 : f32 to vector<16x128xf32>
    %8 = arith.maximumf %6, %7 : vector<16x128xf32>
    %9 = arith.truncf %8 : vector<16x128xf32> to vector<16x128xbf16>
    %c0_6 = arith.constant 0 : index
    %c0_7 = arith.constant 0 : index
    %10 = vector.load %arg4[%c0_6, %c0_7] : memref<128x128xbf16, #tpu.memory_space<vmem>>, vector<128x128xbf16>
    %cst_8 = arith.constant dense<0.000000e+00> : vector<16x128xf32>
    %11 = tpu.matmul %9, %10, %cst_8 {dimension_numbers = #tpu.dot_dimension_numbers<[1], [0], [0], [1], [0, 0, 1, 1], [], []>} : vector<16x128xbf16>, vector<128x128xbf16>, vector<16x128xf32> -> vector<16x128xf32>
    %c0_9 = arith.constant 0 : index
    %c0_10 = arith.constant 0 : index
    %12 = vector.load %arg5[%c0_9, %c0_10] : memref<1x128xf32, #tpu.memory_space<vmem>>, vector<1x128xf32>
    %13 = vector.broadcast %12 : vector<1x128xf32> to vector<16x128xf32>
    %14 = arith.addf %11, %13 : vector<16x128xf32>
    %15 = arith.addf %0, %14 : vector<16x128xf32>
    %cst_11 = arith.constant 0.000000e+00 : f32
    %16 = vector.broadcast %cst_11 : f32 to vector<16x128xf32>
    %17 = arith.maximumf %15, %16 : vector<16x128xf32>
    %c0_12 = arith.constant 0 : index
    %c0_13 = arith.constant 0 : index
    %18 = vector.load %arg6[%c0_12, %c0_13] : memref<16x128xf32, #tpu.memory_space<vmem>>, vector<16x128xf32>
    tpu.vector_store %arg6[%c0_12, %c0_13], %17 {strides = array<i32>} : memref<16x128xf32, #tpu.memory_space<vmem>>, vector<16x128xf32>,
    return
  }
  func.func @transform_0(%arg0: i32) -> (i32, i32) {
    %c0_i32 = arith.constant 0 : i32
    %c0_i32_0 = arith.constant 0 : i32
    return %arg0, %c0_i32 : i32, i32
  }
  func.func @transform_1(%arg0: i32) -> (i32, i32) {
    %c0_i32 = arith.constant 0 : i32
    %c0_i32_0 = arith.constant 0 : i32
    %c0_i32_1 = arith.constant 0 : i32
    return %c0_i32, %c0_i32_0 : i32, i32
  }
  func.func @transform_2(%arg0: i32) -> (i32, i32) {
    %c0_i32 = arith.constant 0 : i32
    %c0_i32_0 = arith.constant 0 : i32
    %c0_i32_1 = arith.constant 0 : i32
    return %c0_i32, %c0_i32_0 : i32, i32
  }
  func.func @transform_3(%arg0: i32) -> (i32, i32) {
    %c0_i32 = arith.constant 0 : i32
    %c0_i32_0 = arith.constant 0 : i32
    %c0_i32_1 = arith.constant 0 : i32
    return %c0_i32, %c0_i32_0 : i32, i32
  }
  func.func @transform_4(%arg0: i32) -> (i32, i32) {
    %c0_i32 = arith.constant 0 : i32
    %c0_i32_0 = arith.constant 0 : i32
    %c0_i32_1 = arith.constant 0 : i32
    return %c0_i32, %c0_i32_0 : i32, i32
  }
  func.func @transform_5(%arg0: i32) -> (i32, i32) {
    %c0_i32 = arith.constant 0 : i32
    %c0_i32_0 = arith.constant 0 : i32
    return %arg0, %c0_i32 : i32, i32
  }
}

</mosaic_0001>

<llo_original>
// kernel: residual_layer.1
$region0: #{residual_layer.1}
  #allocation0 [shape = 'u32[]', space=smem, size = 0x4, offset = 0x4, fixed_abs, tag = 'smem constant byte address 0x4 - core index']
  #allocation1 [shape = 'u32[72,128]{1,0:T(1,128)}', space=vmem, size = 0x9000, scoped, tag = 'internal scratch']
  %s0 = inlined_call_operand.vmem [shape: f32[32,128], index: 0, kind: input, shape index: {}, may-alias: {0,5}]
  %s1 = inlined_call_operand.vmem [shape: bf16[128,128], index: 1, kind: input, shape index: {}]
  %s2 = inlined_call_operand.vmem [shape: f32[1,128], index: 2, kind: input, shape index: {}]
  %s3 = inlined_call_operand.vmem [shape: bf16[128,128], index: 3, kind: input, shape index: {}]
  %s4 = inlined_call_operand.vmem [shape: f32[1,128], index: 4, kind: input, shape index: {}]
  %s5 = inlined_call_operand.vmem [shape: f32[32,128], index: 5, kind: output, shape index: {}, may-alias: {0,5}]
  %s6 = sld [smem:[#allocation0]]
  $region53: #{residual_layer.1} parent=0
    _
  %s8 = ssub.s32 1, %s6
  %s9 = scalar_select 0, %s8, %s6
  loop: start=0, step=1, limit=4
  $region2: #{residual_layer.1} parent=0 // loop_pre_header
    _
  $region3: #{residual_layer.1} parent=0 // loop_header
    %s11 = sphi 0, %s15
    %p12 = scmp.ge.s32.totalorder %s11, 4
    %s21 = sphi 0, %s23
    %s24 = sphi 0, %s21
    %s25 = sphi 0, %s24
    %s41 = sphi 0, %s25
    %s45 = sphi 0, %s45
    %s47 = sphi 0, %s45
    %s48 = sphi 0, %s47
    %s62 = sphi 0, %s48
    %s66 = sphi 0, %s66
    %s68 = sphi 0, %s66
    %s69 = sphi 0, %s68
    %s83 = sphi 0, %s69
    %s87 = sphi 0, %s87
    %s89 = sphi 0, %s87
    %s90 = sphi 0, %s89
    %s104 = sphi 0, %s90
    %s108 = sphi 0, %s108
    %s110 = sphi 0, %s108
    %s111 = sphi 0, %s110
    %s125 = sphi 0, %s111
    %s131 = sphi 0, %s133
    %s134 = sphi 0, %s131
    %s135 = sphi 0, %s134
    %s151 = sphi 0, %s135
  $region4: #{residual_layer.1} parent=0 // loop_header_branch
    %14 = sbr.rel (%p12) target = $region8
  $region5: #{residual_layer.1} parent=0 // loop_body
    %s16 = ssub.s32 %s11, 1
    %s17 = ssub.s32 %s11, 2
    %s18 = sadd.s32 %s11, 1
    %s19 = ssub.s32 %s11, %s18
    %p20 = scmp.eq.s32.totalorder %s19, 0
    %s22 = sadd.s32 %s21, 1
    %s23 = scalar_select %p20, %s21, %s22
    %p26 = pneg %p20
    %p27 = scmp.eq.s32.totalorder %s11, 1
    %p28 = por %p26, %p27
    %p29 = scmp.ne.s32.totalorder %s21, %s24
    %p30 = scmp.eq.s32.totalorder %s11, 0
    %p31 = por %p29, %p30
    %p32 = scmp.ne.s32.totalorder %s21, %s24
    %p33 = scmp.eq.s32.totalorder %s16, 1
    %p34 = por %p32, %p33
    %p35 = scmp.ne.s32.totalorder %s24, %s25
    %p36 = scmp.eq.s32.totalorder %s16, 0
    %p37 = por %p35, %p36
    %p38 = scmp.ne.s32.totalorder %s24, %s25
    %p39 = scmp.eq.s32.totalorder %s17, 1
    %p40 = por %p38, %p39
    %p42 = scmp.ne.s32.totalorder %s25, %s41
    %p43 = scmp.eq.s32.totalorder %s17, 0
    %p44 = por %p42, %p43
    %s46 = sadd.s32 %s45, 1
    %p49 = scmp.eq.s32.totalorder %s11, 1
    %p50 = scmp.ne.s32.totalorder %s45, %s47
    %p51 = scmp.eq.s32.totalorder %s11, 0
    %p52 = por %p50, %p51
    %p53 = scmp.ne.s32.totalorder %s45, %s47
    %p54 = scmp.eq.s32.totalorder %s16, 1
    %p55 = por %p53, %p54
    %p56 = scmp.ne.s32.totalorder %s47, %s48
    %p57 = scmp.eq.s32.totalorder %s16, 0
    %p58 = por %p56, %p57
    %p59 = scmp.ne.s32.totalorder %s47, %s48
    %p60 = scmp.eq.s32.totalorder %s17, 1
    %p61 = por %p59, %p60
    %p63 = scmp.ne.s32.totalorder %s48, %s62
    %p64 = scmp.eq.s32.totalorder %s17, 0
    %p65 = por %p63, %p64
    %s67 = sadd.s32 %s66, 1
    %p70 = scmp.eq.s32.totalorder %s11, 1
    %p71 = scmp.ne.s32.totalorder %s66, %s68
    %p72 = scmp.eq.s32.totalorder %s11, 0
    %p73 = por %p71, %p72
    %p74 = scmp.ne.s32.totalorder %s66, %s68
    %p75 = scmp.eq.s32.totalorder %s16, 1
    %p76 = por %p74, %p75
    %p77 = scmp.ne.s32.totalorder %s68, %s69
    %p78 = scmp.eq.s32.totalorder %s16, 0
    %p79 = por %p77, %p78
    %p80 = scmp.ne.s32.totalorder %s68, %s69
    %p81 = scmp.eq.s32.totalorder %s17, 1
    %p82 = por %p80, %p81
    %p84 = scmp.ne.s32.totalorder %s69, %s83
    %p85 = scmp.eq.s32.totalorder %s17, 0
    %p86 = por %p84, %p85
    %s88 = sadd.s32 %s87, 1
    %p91 = scmp.eq.s32.totalorder %s11, 1
    %p92 = scmp.ne.s32.totalorder %s87, %s89
    %p93 = scmp.eq.s32.totalorder %s11, 0
    %p94 = por %p92, %p93
    %p95 = scmp.ne.s32.totalorder %s87, %s89
    %p96 = scmp.eq.s32.totalorder %s16, 1
    %p97 = por %p95, %p96
    %p98 = scmp.ne.s32.totalorder %s89, %s90
    %p99 = scmp.eq.s32.totalorder %s16, 0
    %p100 = por %p98, %p99
    %p101 = scmp.ne.s32.totalorder %s89, %s90
    %p102 = scmp.eq.s32.totalorder %s17, 1
    %p103 = por %p101, %p102
    %p105 = scmp.ne.s32.totalorder %s90, %s104
    %p106 = scmp.eq.s32.totalorder %s17, 0
    %p107 = por %p105, %p106
    %s109 = sadd.s32 %s108, 1
    %p112 = scmp.eq.s32.totalorder %s11, 1
    %p113 = scmp.ne.s32.totalorder %s108, %s110
    %p114 = scmp.eq.s32.totalorder %s11, 0
    %p115 = por %p113, %p114
    %p116 = scmp.ne.s32.totalorder %s108, %s110
    %p117 = scmp.eq.s32.totalorder %s16, 1
    %p118 = por %p116, %p117
    %p119 = scmp.ne.s32.totalorder %s110, %s111
    %p120 = scmp.eq.s32.totalorder %s16, 0
    %p121 = por %p119, %p120
    %p122 = scmp.ne.s32.totalorder %s110, %s111
    %p123 = scmp.eq.s32.totalorder %s17, 1
    %p124 = por %p122, %p123
    %p126 = scmp.ne.s32.totalorder %s111, %s125
    %p127 = scmp.eq.s32.totalorder %s17, 0
    %p128 = por %p126, %p127
    %s129 = ssub.s32 %s11, %s18
    %p130 = scmp.eq.s32.totalorder %s129, 0
    %s132 = sadd.s32 %s131, 1
    %s133 = scalar_select %p130, %s131, %s132
    %p136 = pneg %p130
    %p137 = scmp.eq.s32.totalorder %s11, 1
    %p138 = por %p136, %p137
    %p139 = scmp.ne.s32.totalorder %s131, %s134
    %p140 = scmp.eq.s32.totalorder %s11, 0
    %p141 = por %p139, %p140
    %p142 = scmp.ne.s32.totalorder %s131, %s134
    %p143 = scmp.eq.s32.totalorder %s16, 1
    %p144 = por %p142, %p143
    %p145 = scmp.ne.s32.totalorder %s134, %s135
    %p146 = scmp.eq.s32.totalorder %s16, 0
    %p147 = por %p145, %p146
    %p148 = scmp.ne.s32.totalorder %s134, %s135
    %p149 = scmp.eq.s32.totalorder %s17, 1
    %p150 = por %p148, %p149
    %p152 = scmp.ne.s32.totalorder %s135, %s151
    %p153 = scmp.eq.s32.totalorder %s17, 0
    %p154 = por %p152, %p153
    %p155 = scmp.le.s32.totalorder 1, %s11
    %p156 = scmp.lt.s32.totalorder %s11, 3
    %p157 = pnand %p155, %p156
    %p158 = pneg %p157
    // Predicated region
    $region9: #{residual_layer.1} parent=5 // pred_check
      _
    $region10: #{residual_layer.1} parent=5 // pred_check_branch
      %160 = sbr.rel (%p157) target = $region12
    $region11: #{residual_layer.1} parent=5 // pred_region
      %s161 = ssub.s32 %s11, 1
      // Predicated region
      $region13: #{residual_layer.1} parent=11 // pred_check
        %p162 = pneg %p58
      $region14: #{residual_layer.1} parent=11 // pred_check_branch
        %164 = sbr.rel (%p162) target = $region16
      $region15: #{residual_layer.1} parent=11 // pred_region
        _
      $region16: #{residual_layer.1} parent=11 // pred_fallthru
        _
      // Predicated region
      $region17: #{residual_layer.1} parent=11 // pred_check
        %p165 = pneg %p79
      $region18: #{residual_layer.1} parent=11 // pred_check_branch
        %167 = sbr.rel (%p165) target = $region20
      $region19: #{residual_layer.1} parent=11 // pred_region
        _
      $region20: #{residual_layer.1} parent=11 // pred_fallthru
        _
      // Predicated region
      $region21: #{residual_layer.1} parent=11 // pred_check
        %p168 = pneg %p100
      $region22: #{residual_layer.1} parent=11 // pred_check_branch
        %170 = sbr.rel (%p168) target = $region24
      $region23: #{residual_layer.1} parent=11 // pred_region
        _
      $region24: #{residual_layer.1} parent=11 // pred_fallthru
        _
      // Predicated region
      $region25: #{residual_layer.1} parent=11 // pred_check
        %p171 = pneg %p121
      $region26: #{residual_layer.1} parent=11 // pred_check_branch
        %173 = sbr.rel (%p171) target = $region28
      $region27: #{residual_layer.1} parent=11 // pred_region
        _
      $region28: #{residual_layer.1} parent=11 // pred_fallthru
        _
    $region12: #{residual_layer.1} parent=5 // pred_fallthru
      _
    %p174 = scmp.lt.s32.totalorder %s11, 2
    // Predicated region
    $region29: #{residual_layer.1} parent=5 // pred_check
      %p175 = pneg %p174
    $region30: #{residual_layer.1} parent=5 // pred_check_branch
      %177 = sbr.rel (%p175) target = $region32
    $region31: #{residual_layer.1} parent=5 // pred_region
      // Predicated region
      $region33: #{residual_layer.1} parent=31 // pred_check
        %p178 = pneg %p31
      $region34: #{residual_layer.1} parent=31 // pred_check_branch
        %180 = sbr.rel (%p178) target = $region36
      $region35: #{residual_layer.1} parent=31 // pred_region
        %s181 = smul.u32 2, %s11
        %p182 = scmp.lt.s32.totalorder %s181, 3
        %s183 = scalar_select %p182, %s181, 3
        %s184 = smul.addr %s183, 8
        %s185 = scalar_lea.vmem %s0, %s184
        %s186 = smul.u32 2, %s11
      $region36: #{residual_layer.1} parent=31 // pred_fallthru
        _
    $region32: #{residual_layer.1} parent=5 // pred_fallthru
      _
    %p187 = scmp.le.s32.totalorder 1, %s11
    %p188 = scmp.lt.s32.totalorder %s11, 3
    %p189 = pnand %p187, %p188
    %p190 = pneg %p189
    // Predicated region
    $region37: #{residual_layer.1} parent=5 // pred_check
      _
    $region38: #{residual_layer.1} parent=5 // pred_check_branch
      %192 = sbr.rel (%p189) target = $region40
    $region39: #{residual_layer.1} parent=5 // pred_region
      %s193 = ssub.s32 %s11, 1
      %s194 = smul.u32 2, %s16
      %p195 = scmp.lt.s32.totalorder %s194, 3
      %s196 = scalar_select %p195, %s194, 3
      %s197 = smul.addr %s196, 8
      %s198 = scalar_lea.vmem %s0, %s197
      %p199 = pneg %p37
      %p200 = pneg %p34
      %p201 = pneg %p58
      %p202 = pneg %p55
      %p203 = pneg %p79
      %p204 = pneg %p76
      %p205 = pneg %p100
      %p206 = pneg %p97
      %p207 = pneg %p121
      %p208 = pneg %p118
      %p209 = pneg %p147
      %p210 = pneg %p144
      %s211 = smul.u32 2, %s16
      %p212 = scmp.lt.s32.totalorder %s211, 3
      %s213 = scalar_select %p212, %s211, 3
      %s214 = smul.addr %s213, 8
      %s215 = scalar_lea.vmem %s5, %s214
      %s216 = smul.u32 2, %s16
      %p217 = scmp.lt.s32.totalorder %s216, 3
      %s218 = scalar_select %p217, %s216, 3
      %s219 = smul.addr %s218, 8
      %s220 = scalar_lea.vmem %s0, %s219
      %s221 = smul.u32 2, %s16
      %s222 = smul.u32 2, %s16
      %p223 = scmp.lt.s32.totalorder %s222, 3
      %s224 = scalar_select %p223, %s222, 3
      %s225 = smul.addr %s224, 8
      %s226 = scalar_lea.vmem %s5, %s225
      %s227 = smul.u32 2, %s16
      %v228 = vld [vmem:[%s220] sm:$0xff]
      %v229 = vld [vmem:[%s220 + $0x8] sm:$0xff]
      %v230 = vpack.c.bf16 %v229, %v228
      %v231 = vld [vmem:[%s1] sm:$0xf]
      %v232 = vld [vmem:[%s1 + $0x4] sm:$0xf]
      %v233 = vld [vmem:[%s1 + $0x8] sm:$0xf]
      %v234 = vld [vmem:[%s1 + $0xc] sm:$0xf]
      %v235 = vld [vmem:[%s1 + $0x10] sm:$0xf]
      %v236 = vld [vmem:[%s1 + $0x14] sm:$0xf]
      %v237 = vld [vmem:[%s1 + $0x18] sm:$0xf]
      %v238 = vld [vmem:[%s1 + $0x1c] sm:$0xf]
      %v239 = vld [vmem:[%s1 + $0x20] sm:$0xf]
      %v240 = vld [vmem:[%s1 + $0x24] sm:$0xf]
      %v241 = vld [vmem:[%s1 + $0x28] sm:$0xf]
      %v242 = vld [vmem:[%s1 + $0x2c] sm:$0xf]
      %v243 = vld [vmem:[%s1 + $0x30] sm:$0xf]
      %v244 = vld [vmem:[%s1 + $0x34] sm:$0xf]
      %v245 = vld [vmem:[%s1 + $0x38] sm:$0xf]
      %v246 = vld [vmem:[%s1 + $0x3c] sm:$0xf]
      %v247 = vld [vmem:[%s2] sm:$0x1]
      %v249 = vperm.slane %v247, 0
      %v267 = vunpack.c.l.b16 %v231
      %v268 = vunpack.c.l.b16 %v232
      %v269 = vunpack.c.l.b16 %v233
      %v270 = vunpack.c.l.b16 %v234
      %v271 = vunpack.c.l.b16 %v235
      %v272 = vunpack.c.l.b16 %v236
      %v273 = vunpack.c.l.b16 %v237
      %v274 = vunpack.c.l.b16 %v238
      %v275 = vunpack.c.l.b16 %v239
      %v276 = vunpack.c.l.b16 %v240
      %v277 = vunpack.c.l.b16 %v241
      %v278 = vunpack.c.l.b16 %v242
      %v279 = vunpack.c.l.b16 %v243
      %v280 = vunpack.c.l.b16 %v244
      %v281 = vunpack.c.l.b16 %v245
      %v282 = vunpack.c.l.b16 %v246
      %v283 = vpack.c.b16 %v268, %v267
      %v284 = vpack.c.b16 %v270, %v269
      %v285 = vpack.c.b16 %v272, %v271
      %v286 = vpack.c.b16 %v274, %v273
      %v287 = vpack.c.b16 %v276, %v275
      %v288 = vpack.c.b16 %v278, %v277
      %v289 = vpack.c.b16 %v280, %v279
      %v290 = vpack.c.b16 %v282, %v281
      %299 = vmatpush.bf16.msra.mxu0 %v290
      %300 = vmatpush.bf16.msra.mxu0 %v289
      %301 = vmatpush.bf16.msra.mxu0 %v288
      %302 = vmatpush.bf16.msra.mxu0 %v287
      %303 = vmatpush.bf16.msra.mxu0 %v286
      %304 = vmatpush.bf16.msra.mxu0 %v285
      %305 = vmatpush.bf16.msra.mxu0 %v284
      %306 = vmatpush.bf16.msra.mxu0 %v283
      %307 = vmatmul.bf16.gmra.mxu0 %v230
      %v308 = vpop.f32.mrf.mxu0
      %v309 = vadd.f32 %v249, %v308
      %v310 = vpop.f32.mrf.mxu0
      %v311 = vadd.f32 %v249, %v310
      %312 = vdwg.mxu0
      %v313 = vmax.f32 %v309, 0.0
      %v314 = vmax.f32 %v311, 0.0
      %v315 = vpack.c.bf16 %v314, %v313
      %v316 = vld [vmem:[%s3] sm:$0xf]
      %v317 = vld [vmem:[%s3 + $0x4] sm:$0xf]
      %v318 = vld [vmem:[%s3 + $0x8] sm:$0xf]
      %v319 = vld [vmem:[%s3 + $0xc] sm:$0xf]
      %v320 = vld [vmem:[%s3 + $0x10] sm:$0xf]
      %v321 = vld [vmem:[%s3 + $0x14] sm:$0xf]
      %v322 = vld [vmem:[%s3 + $0x18] sm:$0xf]
      %v323 = vld [vmem:[%s3 + $0x1c] sm:$0xf]
      %v324 = vld [vmem:[%s3 + $0x20] sm:$0xf]
      %v325 = vld [vmem:[%s3 + $0x24] sm:$0xf]
      %v326 = vld [vmem:[%s3 + $0x28] sm:$0xf]
      %v327 = vld [vmem:[%s3 + $0x2c] sm:$0xf]
      %v328 = vld [vmem:[%s3 + $0x30] sm:$0xf]
      %v329 = vld [vmem:[%s3 + $0x34] sm:$0xf]
      %v330 = vld [vmem:[%s3 + $0x38] sm:$0xf]
      %v331 = vld [vmem:[%s3 + $0x3c] sm:$0xf]
      %v332 = vld [vmem:[%s4] sm:$0x1]
      %v334 = vperm.slane %v332, 0
      %v352 = vunpack.c.l.b16 %v316
      %v353 = vunpack.c.l.b16 %v317
      %v354 = vunpack.c.l.b16 %v318
      %v355 = vunpack.c.l.b16 %v319
      %v356 = vunpack.c.l.b16 %v320
      %v357 = vunpack.c.l.b16 %v321
      %v358 = vunpack.c.l.b16 %v322
      %v359 = vunpack.c.l.b16 %v323
      %v360 = vunpack.c.l.b16 %v324
      %v361 = vunpack.c.l.b16 %v325
      %v362 = vunpack.c.l.b16 %v326
      %v363 = vunpack.c.l.b16 %v327
      %v364 = vunpack.c.l.b16 %v328
      %v365 = vunpack.c.l.b16 %v329
      %v366 = vunpack.c.l.b16 %v330
      %v367 = vunpack.c.l.b16 %v331
      %v368 = vpack.c.b16 %v353, %v352
      %v369 = vpack.c.b16 %v355, %v354
      %v370 = vpack.c.b16 %v357, %v356
      %v371 = vpack.c.b16 %v359, %v358
      %v372 = vpack.c.b16 %v361, %v360
      %v373 = vpack.c.b16 %v363, %v362
      %v374 = vpack.c.b16 %v365, %v364
      %v375 = vpack.c.b16 %v367, %v366
      %384 = vmatpush.bf16.msra.mxu0 %v375
      %385 = vmatpush.bf16.msra.mxu0 %v374
      %386 = vmatpush.bf16.msra.mxu0 %v373
      %387 = vmatpush.bf16.msra.mxu0 %v372
      %388 = vmatpush.bf16.msra.mxu0 %v371
      %389 = vmatpush.bf16.msra.mxu0 %v370
      %390 = vmatpush.bf16.msra.mxu0 %v369
      %391 = vmatpush.bf16.msra.mxu0 %v368
      %392 = vmatmul.bf16.gmra.mxu0 %v315
      %v393 = vpop.f32.mrf.mxu0
      %v394 = vadd.f32 %v334, %v393
      %v395 = vpop.f32.mrf.mxu0
      %v396 = vadd.f32 %v334, %v395
      %397 = vdwg.mxu0
      %v398 = vadd.f32 %v228, %v394
      %v399 = vadd.f32 %v229, %v396
      %v400 = vmax.f32 %v398, 0.0
      %v401 = vmax.f32 %v399, 0.0
      %402 = vst [vmem:[%s226] sm:$0xff] %v400
      %403 = vst [vmem:[%s226 + $0x8] sm:$0xff] %v401
      %s404 = smul.u32 2, %s16
      %p405 = scmp.lt.s32.totalorder %s404, 3
      %s406 = scalar_select %p405, %s404, 3
      %s407 = smul.addr %s406, 8
      %s408 = scalar_lea.vmem %s5, %s407
      // Predicated region
      $region41: #{residual_layer.1} parent=39 // pred_check
        %p409 = pneg %p144
      $region42: #{residual_layer.1} parent=39 // pred_check_branch
        %411 = sbr.rel (%p409) target = $region44
      $region43: #{residual_layer.1} parent=39 // pred_region
        %s412 = smul.u32 2, %s16
      $region44: #{residual_layer.1} parent=39 // pred_fallthru
        _
    $region40: #{residual_layer.1} parent=5 // pred_fallthru
      _
    %p413 = scmp.le.s32.totalorder 2, %s11
    // Predicated region
    $region45: #{residual_layer.1} parent=5 // pred_check
      %p414 = pneg %p413
    $region46: #{residual_layer.1} parent=5 // pred_check_branch
      %416 = sbr.rel (%p414) target = $region48
    $region47: #{residual_layer.1} parent=5 // pred_region
      %s417 = ssub.s32 %s11, 2
      // Predicated region
      $region49: #{residual_layer.1} parent=47 // pred_check
        %p418 = pneg %p150
      $region50: #{residual_layer.1} parent=47 // pred_check_branch
        %420 = sbr.rel (%p418) target = $region52
      $region51: #{residual_layer.1} parent=47 // pred_region
        %s421 = smul.u32 2, %s17
        %p422 = scmp.lt.s32.totalorder %s421, 3
        %s423 = scalar_select %p422, %s421, 3
        %s424 = smul.addr %s423, 8
        %s425 = scalar_lea.vmem %s5, %s424
      $region52: #{residual_layer.1} parent=47 // pred_fallthru
        _
    $region48: #{residual_layer.1} parent=5 // pred_fallthru
      _
  $region6: #{residual_layer.1} parent=0 // loop_footer
    %s15 = sadd.s32 1, %s11
  $region7: #{residual_layer.1} parent=0 // loop_footer_branch
    %10 = sbr.rel target = $region3
  $region8: #{residual_layer.1} parent=0 // loop_exit
    _

</llo_original>
